<compile_context>
chip_gen: v6e
topology: v6e:2x2x1
jax: 0.10.0
libtpu: 0.0.40
codegen_flags: <defaults>
</compile_context>

<pallas_src>
import functools

import jax
import jax.numpy as jnp
from jax.experimental import pallas as pl
from jax.experimental.pallas import tpu as pltpu


# ---------------------------------------------------------------------------
# Helpers
# ---------------------------------------------------------------------------

def _round_up(x, m):
    return (x + m - 1) // m * m


_TM_MAX = 512      # rows per matmul tile (M axis)
_TR_MAX = 2048     # rows per elementwise tile
_VMEM_LIMIT = 32 * 1024 * 1024


def _pick_tile(m, tmax):
    """Row tile: multiple of 8, <= tmax, and (when feasible) giving >= 2 grid
    steps so the 'parallel' M axis can occupy both TensorCores on v7x."""
    m8 = _round_up(max(m, 1), 8)
    if m8 <= 8:
        return 8
    half = _round_up(m8, 16) // 2
    return max(8, min(tmax, half))


# ---------------------------------------------------------------------------
# Pallas kernels
# ---------------------------------------------------------------------------

def _conv_mm_kernel(a_ref, b_ref, bias_ref, o_ref):
    # out = A @ B + bias      (bf16 operands, f32 accumulation, bf16 store)
    acc = jnp.dot(a_ref[...], b_ref[...], preferred_element_type=jnp.float32)
    o_ref[...] = (acc + bias_ref[...]).astype(o_ref.dtype)


def _conv_mm_stats_kernel(a_ref, b_ref, bias_ref, o_ref, s1_ref, s2_ref, *,
                          tm, m_valid):
    # out = A @ B + bias, plus per-column sum / sum-of-squares for the
    # following training-mode BatchNorm (padded rows masked out).
    acc = jnp.dot(a_ref[...], b_ref[...], preferred_element_type=jnp.float32)
    acc = acc + bias_ref[...]
    o_ref[...] = acc.astype(o_ref.dtype)
    row = pl.program_id(0) * tm + jax.lax.broadcasted_iota(jnp.int32, acc.shape, 0)
    v = jnp.where(row < m_valid, acc, 0.0)
    s1_ref[...] = jnp.sum(v, axis=0, keepdims=True)[None]        # (1, 1, N)
    s2_ref[...] = jnp.sum(v * v, axis=0, keepdims=True)[None]    # (1, 1, N)


def _affine_act_kernel(x_ref, sc_ref, sh_ref, sl_ref, o_ref):
    # y = x * scale + shift ; PReLU(y) with per-lane slope
    # slope = 0 -> ReLU, slope = 1 -> identity (BatchNorm only)
    y = x_ref[...].astype(jnp.float32) * sc_ref[...] + sh_ref[...]
    y = jnp.where(y >= 0.0, y, y * sl_ref[...])
    o_ref[...] = y.astype(o_ref.dtype)


def _affine_act_res_kernel(x_ref, m_ref, sc_ref, sh_ref, sl_ref, o_ref):
    # fused bottleneck tail: relu(main + act(x * scale + shift))
    y = x_ref[...].astype(jnp.float32) * sc_ref[...] + sh_ref[...]
    y = jnp.where(y >= 0.0, y, y * sl_ref[...])
    o_ref[...] = jnp.maximum(m_ref[...].astype(jnp.float32) + y, 0.0).astype(o_ref.dtype)


# ---------------------------------------------------------------------------
# Pallas call wrappers
# ---------------------------------------------------------------------------

def _conv_mm_call(a_p, b_p, bias2d, *, tm, m_valid, want_stats):
    Mp, Kp = a_p.shape
    _, N = b_p.shape
    grid_m = Mp // tm

    a_spec = pl.BlockSpec((tm, Kp), lambda i: (i, 0))
    b_spec = pl.BlockSpec((Kp, N), lambda i: (0, 0))        # resident across grid
    bias_spec = pl.BlockSpec((1, N), lambda i: (0, 0))
    o_spec = pl.BlockSpec((tm, N), lambda i: (i, 0))

    cp = pltpu.CompilerParams(dimension_semantics=("parallel",),
                              vmem_limit_bytes=_VMEM_LIMIT)

    if want_stats:
        kernel = functools.partial(_conv_mm_stats_kernel, tm=tm, m_valid=m_valid)
        out_shape = (jax.ShapeDtypeStruct((Mp, N), jnp.bfloat16),
                     jax.ShapeDtypeStruct((grid_m, 1, N), jnp.float32),
                     jax.ShapeDtypeStruct((grid_m, 1, N), jnp.float32))
        out_specs = (o_spec,
                     pl.BlockSpec((1, 1, N), lambda i: (i, 0, 0)),
                     pl.BlockSpec((1, 1, N), lambda i: (i, 0, 0)))
    else:
        kernel = _conv_mm_kernel
        out_shape = jax.ShapeDtypeStruct((Mp, N), jnp.bfloat16)
        out_specs = o_spec

    return pl.pallas_call(
        kernel,
        out_shape=out_shape,
        grid_spec=pltpu.PrefetchScalarGridSpec(
            num_scalar_prefetch=0,
            grid=(grid_m,),
            in_specs=[a_spec, b_spec, bias_spec],
            out_specs=out_specs),
        compiler_params=cp,
    )(a_p, b_p, bias2d)


def _conv_matmul(a, b_mat, bias, want_stats, n_channels):
    """(M,K) @ (K,Ncols) + bias; bf16 in/out, f32 accumulation.

    When Ncols < 128, `reps` consecutive rows are packed onto the lane axis
    via a block-diagonal weight so the output store is an unmasked 128-lane
    slab.  Optionally also returns per-channel (sum, sumsq) f32 stats."""
    M, K = a.shape
    _, Ncols = b_mat.shape

    reps = 1
    if Ncols < 128 and 128 % Ncols == 0 and M % (128 // Ncols) == 0:
        reps = 128 // Ncols
    Mw, Kw, Nw = M // reps, K * reps, Ncols * reps
    if reps > 1:
        a = a.reshape(Mw, Kw)                                  # free bitcast
        b_mat = jnp.kron(jnp.eye(reps, dtype=b_mat.dtype), b_mat)
        bias = jnp.tile(bias, reps)

    Kp = _round_up(Kw, 16)                                     # bf16 sublane packing
    tm = _pick_tile(Mw, _TM_MAX)
    Mp = _round_up(Mw, tm)

    a_p = jnp.pad(a.astype(jnp.bfloat16), ((0, Mp - Mw), (0, Kp - Kw)))
    b_p = jnp.pad(b_mat.astype(jnp.bfloat16), ((0, Kp - Kw), (0, 0)))
    bias2d = bias.reshape(1, Nw).astype(jnp.float32)

    res = _conv_mm_call(a_p, b_p, bias2d, tm=tm, m_valid=Mw, want_stats=want_stats)
    if want_stats:
        out, s1, s2 = res
        s1 = jnp.sum(s1, axis=(0, 1)).reshape(-1, n_channels).sum(axis=0)
        s2 = jnp.sum(s2, axis=(0, 1)).reshape(-1, n_channels).sum(axis=0)
        return out[:Mw].reshape(M, Ncols), jnp.stack([s1, s2])
    return res[:Mw].reshape(M, Ncols)


def _affine_act_call(x2d, main2d, sc, sh, sl, *, tr, with_res):
    R, L = x2d.shape
    grid_r = R // tr
    row_spec = pl.BlockSpec((tr, L), lambda i: (i, 0))
    par_spec = pl.BlockSpec((1, L), lambda i: (0, 0))
    if with_res:
        kernel = _affine_act_res_kernel
        in_specs = [row_spec, row_spec, par_spec, par_spec, par_spec]
        args = (x2d, main2d, sc, sh, sl)
    else:
        kernel = _affine_act_kernel
        in_specs = [row_spec, par_spec, par_spec, par_spec]
        args = (x2d, sc, sh, sl)
    return pl.pallas_call(
        kernel,
        out_shape=jax.ShapeDtypeStruct((R, L), jnp.bfloat16),
        grid_spec=pltpu.PrefetchScalarGridSpec(
            num_scalar_prefetch=0,
            grid=(grid_r,),
            in_specs=in_specs,
            out_specs=row_spec),
        compiler_params=pltpu.CompilerParams(
            dimension_semantics=("parallel",),
            vmem_limit_bytes=_VMEM_LIMIT),
    )(*args)


def _apply_affine_act(x2d, main2d, scale, shift, slope):
    """Row-tiled, lane-dense elementwise y = act(x*scale+shift) [+main, relu]."""
    M, C = x2d.shape
    reps = 1
    if C < 128 and 128 % C == 0 and M % (128 // C) == 0:
        reps = 128 // C                       # lane-dense repack: (R, 128)
    L = C * reps
    R = M // reps
    xs = x2d.reshape(R, L)
    ms = None if main2d is None else main2d.reshape(R, L)
    sc = jnp.tile(scale.astype(jnp.float32), reps).reshape(1, L)
    sh = jnp.tile(shift.astype(jnp.float32), reps).reshape(1, L)
    sl = jnp.tile(slope.astype(jnp.float32), reps).reshape(1, L)

    tr = _pick_tile(R, _TR_MAX)
    Rp = _round_up(R, tr)
    if Rp != R:
        xs = jnp.pad(xs, ((0, Rp - R), (0, 0)))
        if ms is not None:
            ms = jnp.pad(ms, ((0, Rp - R), (0, 0)))
    out = _affine_act_call(xs, ms, sc, sh, sl, tr=tr, with_res=(ms is not None))
    return out[:R].reshape(M, C)


@jax.jit
def bn_act(x4d, bn, slope, stats, main4d=None, eps=1e-3):
    """Training-mode BatchNorm2d (from fused conv stats) + PReLU/ReLU/identity.

    If main4d is given, additionally computes relu(main + activated) (fused
    bottleneck residual tail)."""
    N_, H, W, C = x4d.shape
    count = jnp.float32(N_ * H * W)
    mean = stats[0] / count
    var = jnp.maximum(stats[1] / count - mean * mean, 0.0)   # biased variance
    scale = bn["gamma"] / jnp.sqrt(var + eps)
    shift = bn["beta"] - mean * scale
    out2d = _apply_affine_act(
        x4d.reshape(-1, C),
        None if main4d is None else main4d.reshape(-1, C),
        scale, shift, slope)
    return out2d.reshape(N_, H, W, C)


# ---------------------------------------------------------------------------
# Conv / transposed-conv / pooling building blocks
# ---------------------------------------------------------------------------

@functools.partial(jax.jit,
                   static_argnames=("stride", "padding", "dilation", "want_stats"))
def conv2d(x, w, b=None, stride=(1, 1), padding=((0, 0), (0, 0)),
           dilation=(1, 1), want_stats=False):
    """x: (N,H,W,Cin) NHWC bf16; w: (O, Cin, kh, kw) PyTorch layout -> (N,Ho,Wo,O)."""
    O, Cin, kh, kw = w.shape
    (ph0, ph1), (pw0, pw1) = padding
    sh, sw = stride
    dh, dw = dilation
    xp = jnp.pad(x, ((0, 0), (ph0, ph1), (pw0, pw1), (0, 0)))
    N, Hp, Wp, _ = xp.shape
    Ho = (Hp - (dh * (kh - 1) + 1)) // sh + 1
    Wo = (Wp - (dw * (kw - 1) + 1)) // sw + 1
    if kh == 1 and kw == 1 and sh == 1 and sw == 1:
        patches = xp
    else:
        # TODO(synk): patches are materialized outside the kernel (bf16, fused
        # under this jit); in-kernel tap-folded gather not implemented.
        cols = []
        for i in range(kh):
            for j in range(kw):
                cols.append(xp[:, i * dh: i * dh + sh * (Ho - 1) + 1: sh,
                               j * dw: j * dw + sw * (Wo - 1) + 1: sw, :])
        patches = jnp.concatenate(cols, axis=-1)       # (N,Ho,Wo, kh*kw*Cin)
    a = patches.reshape(N * Ho * Wo, kh * kw * Cin)
    wm = jnp.transpose(w, (2, 3, 1, 0)).reshape(kh * kw * Cin, O)
    bias = b if b is not None else jnp.zeros((O,), jnp.float32)
    res = _conv_matmul(a, wm, bias, want_stats, O)
    if want_stats:
        out2d, stats = res
        return out2d.reshape(N, Ho, Wo, O), stats
    return res.reshape(N, Ho, Wo, O)


def _interleave2x2(p00, p01, p10, p11):
    """pab[n,i,j,c] -> out[n, 2i+a, 2j+b, c]."""
    N, H, W, C = p00.shape
    row0 = jnp.stack([p00, p01], axis=3)     # (N,H,W,2,C)  b index
    row1 = jnp.stack([p10, p11], axis=3)
    out = jnp.stack([row0, row1], axis=2)    # (N,H,2,W,2,C) -> [n,i,a,j,b,c]
    return out.reshape(N, 2 * H, 2 * W, C)


@functools.partial(jax.jit, static_argnames=("want_stats",))
def conv_transpose2d_3x3_s2(x, w, b, want_stats=False):
    """ConvTranspose2d(k=3, stride=2, padding=1, output_padding=1) via sub-pixel
    (per-output-phase) decomposition: one matmul over a 2x2 window producing
    all 4 output phases (no zero-dilated intermediate).
    w: (Cin, Cout, 3, 3) PyTorch ConvTranspose2d layout."""
    Cin, Cout, _, _ = w.shape
    N_, H, W, _ = x.shape
    xp = jnp.pad(x, ((0, 0), (0, 1), (0, 1), (0, 0)))       # halo for odd phases
    cols = [xp[:, di:di + H, dj:dj + W, :] for di in (0, 1) for dj in (0, 1)]
    a = jnp.concatenate(cols, axis=-1).reshape(N_ * H * W, 4 * Cin)

    # out[2i+a, 2j+b] = sum over taps (di,dj) of x[i+di, j+dj] @ w[:, :, a+1-2di, b+1-2dj]
    wm = jnp.zeros((4, Cin, 4, Cout), jnp.float32)
    for di in (0, 1):
        for dj in (0, 1):
            for ai in (0, 1):
                for bi in (0, 1):
                    khi, kwi = ai + 1 - 2 * di, bi + 1 - 2 * dj
                    if 0 <= khi <= 2 and 0 <= kwi <= 2:
                        wm = wm.at[di * 2 + dj, :, ai * 2 + bi, :].set(w[:, :, khi, kwi])
    wm = wm.reshape(4 * Cin, 4 * Cout)
    bias = jnp.tile(b, 4) if b is not None else jnp.zeros((4 * Cout,), jnp.float32)

    res = _conv_matmul(a, wm, bias, want_stats, Cout)
    cols_out = res[0] if want_stats else res
    o = cols_out.reshape(N_, H, W, 4, Cout)
    y = _interleave2x2(o[:, :, :, 0, :], o[:, :, :, 1, :],
                       o[:, :, :, 2, :], o[:, :, :, 3, :])
    if want_stats:
        return y, res[1]
    return y


@jax.jit
def conv_transpose2d_2x2_s2(x, w, b):
    """ConvTranspose2d(k=2, stride=2, padding=0): out[2i+a,2j+b] = x[i,j] @ w[:,:,a,b]."""
    Cin, Cout = w.shape[0], w.shape[1]
    N_, H, W, _ = x.shape
    a = x.reshape(N_ * H * W, Cin)
    wm = jnp.transpose(w, (0, 2, 3, 1)).reshape(Cin, 4 * Cout)
    bias = jnp.tile(b, 4)
    o = _conv_matmul(a, wm, bias, False, Cout).reshape(N_, H, W, 4, Cout)
    return _interleave2x2(o[:, :, :, 0, :], o[:, :, :, 1, :],
                          o[:, :, :, 2, :], o[:, :, :, 3, :])


@functools.partial(jax.jit, static_argnames=("return_indices",))
def max_pool2x2(x, return_indices=False):
    N, H, W, C = x.shape
    xr = x.reshape(N, H // 2, 2, W // 2, 2, C)
    xr = jnp.transpose(xr, (0, 1, 3, 5, 2, 4)).reshape(N, H // 2, W // 2, C, 4)
    val = jnp.max(xr, axis=-1)
    if not return_indices:
        return val
    idx = jnp.argmax(xr, axis=-1)   # position within the 2x2 window (row*2+col)
    return val, idx


@jax.jit
def max_unpool2x2(v, idx):
    # 4 phase-wise selects + interleave (no one-hot (N,H,W,C,4) tensor).
    zero = jnp.zeros((), v.dtype)
    phases = [jnp.where(idx == p, v, zero) for p in range(4)]
    return _interleave2x2(phases[0], phases[1], phases[2], phases[3])


# ---------------------------------------------------------------------------
# Deterministic parameter initialization (synthetic; shapes mirror the module)
# ---------------------------------------------------------------------------

class KeyGen:
    def __init__(self, seed):
        self.key = jax.random.PRNGKey(seed)

    def __call__(self):
        self.key, sub = jax.random.split(self.key)
        return sub


def init_w(kg, out_c, in_c, kh, kw):
    fan_in = in_c * kh * kw
    return jax.random.normal(kg(), (out_c, in_c, kh, kw), jnp.float32) / jnp.sqrt(
        jnp.float32(fan_in))


def init_wT(kg, in_c, out_c, kh, kw):
    fan_in = in_c * kh * kw
    return jax.random.normal(kg(), (in_c, out_c, kh, kw), jnp.float32) / jnp.sqrt(
        jnp.float32(fan_in))


def init_b(kg, c):
    return 0.01 * jax.random.normal(kg(), (c,), jnp.float32)


def init_bn(kg, c):
    return {"gamma": 1.0 + 0.1 * jax.random.normal(kg(), (c,), jnp.float32),
            "beta": 0.1 * jax.random.normal(kg(), (c,), jnp.float32)}


def act_slope(c, use_relu):
    # PReLU default init (0.25 per channel); ReLU == slope 0
    return jnp.zeros((c,), jnp.float32) if use_relu else 0.25 * jnp.ones((c,), jnp.float32)


def init_bottleneck(kg, in_c, out_c, downsampling=False, upsampling=False,
                    dilated=False, dilation_rate=None, asymmetric=False,
                    use_relu=False):
    internal = out_c // 4
    s = 2 if downsampling else 1
    p = {"cfg": dict(in_c=in_c, out_c=out_c, internal=internal,
                     down=downsampling, up=upsampling, dilated=dilated,
                     dr=dilation_rate, asym=asymmetric, use_relu=use_relu)}
    # block1x1_1: Conv(in, internal, k=s, stride=s, bias=False) + BN + PReLU/ReLU
    p["w1"] = init_w(kg, internal, in_c, s, s)
    p["bn1"] = init_bn(kg, internal)
    p["a1"] = act_slope(internal, use_relu)
    # middle block
    if downsampling:
        p["wm"] = init_w(kg, internal, internal, 3, 3)
        p["bm"] = init_b(kg, internal)
    elif upsampling:
        p["wm"] = init_wT(kg, internal, internal, 3, 3)   # ConvTranspose2d layout
        p["bm"] = init_b(kg, internal)
        p["ws"] = init_w(kg, out_c, in_c, 1, 1)           # conv_before_unpool
        p["bns"] = init_bn(kg, out_c)
    elif asymmetric:
        p["wm1"] = init_w(kg, internal, internal, 5, 1)   # no bias
        p["wm2"] = init_w(kg, internal, internal, 1, 5)
        p["bm2"] = init_b(kg, internal)
    else:  # dilated or plain
        p["wm"] = init_w(kg, internal, internal, 3, 3)
        p["bm"] = init_b(kg, internal)
    p["bnm"] = init_bn(kg, internal)
    p["am"] = act_slope(internal, use_relu)
    # block1x1_2
    p["w2"] = init_w(kg, out_c, internal, 1, 1)
    p["bn2"] = init_bn(kg, out_c)
    p["a2"] = act_slope(out_c, use_relu)
    return p


def init_enet(kg, num_classes):
    params = {"init": {"w": init_w(kg, 13, 3, 3, 3),
                       "b": init_b(kg, 13),
                       "bn": init_bn(kg, 13),
                       "a": 0.25 * jnp.ones((13,), jnp.float32)}}
    enc = [init_bottleneck(kg, 16, 64, downsampling=True)]
    for _ in range(4):
        enc.append(init_bottleneck(kg, 64, 64))
    enc.append(init_bottleneck(kg, 64, 128, downsampling=True))
    for _ in range(2):
        enc.append(init_bottleneck(kg, 128, 128))
        enc.append(init_bottleneck(kg, 128, 128, dilated=True, dilation_rate=2))
        enc.append(init_bottleneck(kg, 128, 128, asymmetric=True))
        enc.append(init_bottleneck(kg, 128, 128, dilated=True, dilation_rate=4))
        enc.append(init_bottleneck(kg, 128, 128))
        enc.append(init_bottleneck(kg, 128, 128, dilated=True, dilation_rate=8))
        enc.append(init_bottleneck(kg, 128, 128, asymmetric=True))
        enc.append(init_bottleneck(kg, 128, 128, dilated=True, dilation_rate=16))
    params["encoder"] = enc
    dec = [init_bottleneck(kg, 128, 64, upsampling=True, use_relu=True),
           init_bottleneck(kg, 64, 64, use_relu=True),
           init_bottleneck(kg, 64, 64, use_relu=True),
           init_bottleneck(kg, 64, 16, upsampling=True, use_relu=True),
           init_bottleneck(kg, 16, 16, use_relu=True)]
    params["decoder"] = dec
    params["final"] = {"w": init_wT(kg, 16, num_classes, 2, 2),
                       "b": init_b(kg, num_classes)}
    return params


# ---------------------------------------------------------------------------
# Forward pass
# ---------------------------------------------------------------------------

def bottleneck_forward(p, x, pooling_indices=None):
    cfg = p["cfg"]
    s = 2 if cfg["down"] else 1

    # --- "main" (skip) branch ---
    indices = None
    if cfg["down"]:
        main, indices = max_pool2x2(x, return_indices=True)
        if cfg["out_c"] != cfg["in_c"]:
            main = jnp.pad(main, ((0, 0), (0, 0), (0, 0),
                                  (0, cfg["out_c"] - cfg["in_c"])))
    elif cfg["up"]:
        m, st = conv2d(x, p["ws"], None, want_stats=True)
        m = bn_act(m, p["bns"], jnp.ones((cfg["out_c"],), jnp.float32), st)  # BN only
        main = max_unpool2x2(m, pooling_indices)
    else:
        main = x

    # --- "other" (bottleneck) branch ---
    h, st = conv2d(x, p["w1"], None, stride=(s, s), want_stats=True)
    h = bn_act(h, p["bn1"], p["a1"], st)
    if cfg["down"]:
        h, st = conv2d(h, p["wm"], p["bm"], padding=((1, 1), (1, 1)), want_stats=True)
    elif cfg["up"]:
        h, st = conv_transpose2d_3x3_s2(h, p["wm"], p["bm"], want_stats=True)
    elif cfg["dilated"]:
        d = cfg["dr"]
        h, st = conv2d(h, p["wm"], p["bm"], padding=((d, d), (d, d)),
                       dilation=(d, d), want_stats=True)
    elif cfg["asym"]:
        h = conv2d(h, p["wm1"], None, padding=((2, 2), (0, 0)))
        h, st = conv2d(h, p["wm2"], p["bm2"], padding=((0, 0), (2, 2)), want_stats=True)
    else:
        h, st = conv2d(h, p["wm"], p["bm"], padding=((1, 1), (1, 1)), want_stats=True)
    h = bn_act(h, p["bnm"], p["am"], st)
    h, st = conv2d(h, p["w2"], None, want_stats=True)
    # Fused tail: BN + PReLU/ReLU of block1x1_2, residual add, final ReLU.
    out = bn_act(h, p["bn2"], p["a2"], st, main4d=main)

    if cfg["down"]:
        return out, indices
    return out


def enet_forward(params, x_nchw):
    x = jnp.transpose(x_nchw, (0, 2, 3, 1)).astype(jnp.bfloat16)  # NCHW -> NHWC bf16

    # InitialBlock: concat([PReLU(BN(conv3x3 s2)), maxpool2x2(x)], channel)
    ip = params["init"]
    c, st = conv2d(x, ip["w"], ip["b"], stride=(2, 2), padding=((1, 1), (1, 1)),
                   want_stats=True)
    c = bn_act(c, ip["bn"], ip["a"], st)
    out = jnp.concatenate([c, max_pool2x2(x)], axis=-1)           # 13 + 3 = 16 ch

    pooling_stack = []
    for bp in params["encoder"]:
        if bp["cfg"]["down"]:
            out, idx = bottleneck_forward(bp, out)
            pooling_stack.append(idx)
        else:
            out = bottleneck_forward(bp, out)

    for bp in params["decoder"]:
        if bp["cfg"]["up"]:
            idx = pooling_stack.pop()
            out = bottleneck_forward(bp, out, idx)
        else:
            out = bottleneck_forward(bp, out)

    out = conv_transpose2d_2x2_s2(out, params["final"]["w"], params["final"]["b"])
    return jnp.transpose(out, (0, 3, 1, 2)).astype(jnp.float32)   # NHWC -> NCHW f32


# ---------------------------------------------------------------------------
# Main
# ---------------------------------------------------------------------------

if __name__ == "__main__":
    num_classes = 4
    batch, in_ch, H, W = 2, 3, 16, 16

    params = init_enet(KeyGen(42), num_classes)
    x = jax.random.normal(jax.random.PRNGKey(0), (batch, in_ch, H, W),
                          dtype=jnp.float32)

    out = enet_forward(params, x)
    out = jax.block_until_ready(out)

    assert out.shape == (batch, num_classes, H, W), out.shape
    assert out.dtype == jnp.float32
    assert bool(jnp.all(jnp.isfinite(out)))
    print("KERNEL_OK")
</pallas_src>

<mosaic_0001>
module attributes {stable_mosaic.version = 11 : i64} {
  func.func @_conv_mm_stats_kernel(%arg0: i32, %arg1: memref<64x32xbf16, #tpu.memory_space<vmem>>, %arg2: memref<32x13xbf16, #tpu.memory_space<vmem>>, %arg3: memref<1x13xf32, #tpu.memory_space<vmem>>, %arg4: memref<64x13xbf16, #tpu.memory_space<vmem>>, %arg5: memref<1x1x13xf32, #tpu.memory_space<vmem>>, %arg6: memref<1x1x13xf32, #tpu.memory_space<vmem>>) attributes {dimension_semantics = [#tpu.dimension_semantics<parallel>], iteration_bounds = array<i64: 2>, scalar_prefetch = 0 : i64, scratch_operands = 0 : i64, tpu.core_type = #tpu.core_type<tc>, window_params = [{transform_indices = @transform_0, window_bounds = array<i64: 64, 32>}, {pipeline_mode = #tpu.pipeline_mode<synchronous>, transform_indices = @transform_1, window_bounds = array<i64: 32, 13>}, {pipeline_mode = #tpu.pipeline_mode<synchronous>, transform_indices = @transform_2, window_bounds = array<i64: 1, 13>}, {transform_indices = @transform_3, window_bounds = array<i64: 64, 13>}, {transform_indices = @transform_4, window_bounds = array<i64: 1, 1, 13>}, {transform_indices = @transform_5, window_bounds = array<i64: 1, 1, 13>}]} {
    %c0 = arith.constant 0 : index
    %c0_0 = arith.constant 0 : index
    %0 = vector.load %arg1[%c0, %c0_0] : memref<64x32xbf16, #tpu.memory_space<vmem>>, vector<64x32xbf16>
    %c0_1 = arith.constant 0 : index
    %c0_2 = arith.constant 0 : index
    %1 = vector.load %arg2[%c0_1, %c0_2] : memref<32x13xbf16, #tpu.memory_space<vmem>>, vector<32x13xbf16>
    %cst = arith.constant dense<0.000000e+00> : vector<64x13xf32>
    %2 = tpu.matmul %0, %1, %cst {dimension_numbers = #tpu.dot_dimension_numbers<[1], [0], [0], [1], [0, 0, 1, 1], [], []>} : vector<64x32xbf16>, vector<32x13xbf16>, vector<64x13xf32> -> vector<64x13xf32>
    %c0_3 = arith.constant 0 : index
    %c0_4 = arith.constant 0 : index
    %3 = vector.load %arg3[%c0_3, %c0_4] : memref<1x13xf32, #tpu.memory_space<vmem>>, vector<1x13xf32>
    %4 = vector.broadcast %3 : vector<1x13xf32> to vector<64x13xf32>
    %5 = arith.addf %2, %4 : vector<64x13xf32>
    %6 = arith.truncf %5 : vector<64x13xf32> to vector<64x13xbf16>
    %c0_5 = arith.constant 0 : index
    %c0_6 = arith.constant 0 : index
    %7 = vector.load %arg4[%c0_5, %c0_6] : memref<64x13xbf16, #tpu.memory_space<vmem>>, vector<64x13xbf16>
    tpu.vector_store %arg4[%c0_5, %c0_6], %6 {strides = array<i32>} : memref<64x13xbf16, #tpu.memory_space<vmem>>, vector<64x13xbf16>,
    %c64_i32 = arith.constant 64 : i32
    %8 = arith.muli %arg0, %c64_i32 : i32
    %9 = tpu.iota {dimensions = array<i32: 0>} : vector<64x13xi32>
    %10 = vector.broadcast %8 : i32 to vector<64x13xi32>
    %11 = arith.addi %10, %9 : vector<64x13xi32>
    %c128_i32 = arith.constant 128 : i32
    %12 = vector.broadcast %c128_i32 : i32 to vector<64x13xi32>
    %13 = arith.cmpi slt, %11, %12 : vector<64x13xi32>
    %cst_7 = arith.constant 0.000000e+00 : f32
    %14 = vector.broadcast %cst_7 : f32 to vector<64x13xf32>
    %15 = arith.select %13, %5, %14 : vector<64x13xi1>, vector<64x13xf32>
    %cst_8 = arith.constant dense<0.000000e+00> : vector<13xf32>
    %16 = vector.multi_reduction <add>, %15, %cst_8 [0] : vector<64x13xf32> to vector<13xf32>
    %17 = vector.shape_cast %16 : vector<13xf32> to vector<1x13xf32>
    %18 = vector.shape_cast %17 : vector<1x13xf32> to vector<1x1x13xf32>
    %c0_9 = arith.constant 0 : index
    %c0_10 = arith.constant 0 : index
    %c0_11 = arith.constant 0 : index
    %19 = vector.load %arg5[%c0_9, %c0_10, %c0_11] : memref<1x1x13xf32, #tpu.memory_space<vmem>>, vector<1x1x13xf32>
    tpu.vector_store %arg5[%c0_9, %c0_10, %c0_11], %18 {strides = array<i32>} : memref<1x1x13xf32, #tpu.memory_space<vmem>>, vector<1x1x13xf32>,
    %20 = arith.mulf %15, %15 : vector<64x13xf32>
    %cst_12 = arith.constant dense<0.000000e+00> : vector<13xf32>
    %21 = vector.multi_reduction <add>, %20, %cst_12 [0] : vector<64x13xf32> to vector<13xf32>
    %22 = vector.shape_cast %21 : vector<13xf32> to vector<1x13xf32>
    %23 = vector.shape_cast %22 : vector<1x13xf32> to vector<1x1x13xf32>
    %c0_13 = arith.constant 0 : index
    %c0_14 = arith.constant 0 : index
    %c0_15 = arith.constant 0 : index
    %24 = vector.load %arg6[%c0_13, %c0_14, %c0_15] : memref<1x1x13xf32, #tpu.memory_space<vmem>>, vector<1x1x13xf32>
    tpu.vector_store %arg6[%c0_13, %c0_14, %c0_15], %23 {strides = array<i32>} : memref<1x1x13xf32, #tpu.memory_space<vmem>>, vector<1x1x13xf32>,
    return
  }
  func.func @transform_0(%arg0: i32) -> (i32, i32) {
    %c0_i32 = arith.constant 0 : i32
    %c0_i32_0 = arith.constant 0 : i32
    return %arg0, %c0_i32 : i32, i32
  }
  func.func @transform_1(%arg0: i32) -> (i32, i32) {
    %c0_i32 = arith.constant 0 : i32
    %c0_i32_0 = arith.constant 0 : i32
    %c0_i32_1 = arith.constant 0 : i32
    return %c0_i32, %c0_i32_0 : i32, i32
  }
  func.func @transform_2(%arg0: i32) -> (i32, i32) {
    %c0_i32 = arith.constant 0 : i32
    %c0_i32_0 = arith.constant 0 : i32
    %c0_i32_1 = arith.constant 0 : i32
    return %c0_i32, %c0_i32_0 : i32, i32
  }
  func.func @transform_3(%arg0: i32) -> (i32, i32) {
    %c0_i32 = arith.constant 0 : i32
    %c0_i32_0 = arith.constant 0 : i32
    return %arg0, %c0_i32 : i32, i32
  }
  func.func @transform_4(%arg0: i32) -> (i32, i32, i32) {
    %c0_i32 = arith.constant 0 : i32
    %c0_i32_0 = arith.constant 0 : i32
    %c0_i32_1 = arith.constant 0 : i32
    return %arg0, %c0_i32, %c0_i32_0 : i32, i32, i32
  }
  func.func @transform_5(%arg0: i32) -> (i32, i32, i32) {
    %c0_i32 = arith.constant 0 : i32
    %c0_i32_0 = arith.constant 0 : i32
    %c0_i32_1 = arith.constant 0 : i32
    return %arg0, %c0_i32, %c0_i32_0 : i32, i32, i32
  }
}

</mosaic_0001>

<llo_original>
// kernel: conv2d.1
$region0: #{conv2d.1}
  #allocation0 [shape = 'u32[]', space=smem, size = 0x4, offset = 0x4, fixed_abs, tag = 'smem constant byte address 0x4 - core index']
  #allocation1 [shape = 'u32[144,128]{1,0:T(1,128)}', space=vmem, size = 0x12000, scoped, tag = 'internal scratch']
  %s0 = inlined_call_operand.vmem [shape: bf16[128,32], index: 0, kind: input, shape index: {}]
  %s1 = inlined_call_operand.vmem [shape: bf16[32,13], index: 1, kind: input, shape index: {}]
  %s2 = inlined_call_operand.vmem [shape: f32[1,13], index: 2, kind: input, shape index: {}]
  %s3 = inlined_call_operand.hbm [shape: bf16[128,13], index: 3, kind: output, shape index: {0}]
  %s4 = inlined_call_operand.vmem [shape: f32[2,1,13], index: 4, kind: output, shape index: {1}]
  %s5 = inlined_call_operand.vmem [shape: f32[2,1,13], index: 5, kind: output, shape index: {2}]
  %6 = xla_tuple %s3, %s4, %s5
  %s7 = sld [smem:[#allocation0]]
  $region61: #{conv2d.1} parent=0
    _
  %s9 = ssub.s32 1, %s7
  %s10 = scalar_select 0, %s9, %s7
  $region1: #{conv2d.1} parent=0
    #allocation2 [shape = 'u8[32768]{0}', space=vmem, size = 0x8000, scoped, tag = 'output window, operand 0']
    #allocation3 [shape = 's32[2]{0}', space=sflag, size = 0x8, scoped, tag = 'scoped memory for conv2d.1']
    %11 = vsyncpa [#allocation3], 0
    %s12 = scalar_lea.sflag [#allocation3], 1
    %13 = vsyncpa %s12, 0
    loop: start=0, step=1, limit=4
    $region2: #{conv2d.1} parent=1 // loop_pre_header
      _
    $region3: #{conv2d.1} parent=1 // loop_header
      %s15 = sphi 0, %s19
      %p16 = scmp.ge.s32.totalorder %s15, 4
      %s25 = sphi 0, %s27
      %s28 = sphi 0, %s25
      %s29 = sphi 0, %s28
      %s45 = sphi 0, %s29
      %s49 = sphi 0, %s49
      %s51 = sphi 0, %s49
      %s52 = sphi 0, %s51
      %s66 = sphi 0, %s52
      %s70 = sphi 0, %s70
      %s72 = sphi 0, %s70
      %s73 = sphi 0, %s72
      %s87 = sphi 0, %s73
      %s93 = sphi 0, %s95
      %s96 = sphi 0, %s93
      %s97 = sphi 0, %s96
      %s113 = sphi 0, %s97
      %s119 = sphi 0, %s121
      %s122 = sphi 0, %s119
      %s123 = sphi 0, %s122
      %s139 = sphi 0, %s123
      %s145 = sphi 0, %s147
      %s148 = sphi 0, %s145
      %s149 = sphi 0, %s148
      %s165 = sphi 0, %s149
    $region4: #{conv2d.1} parent=1 // loop_header_branch
      %18 = sbr.rel (%p16) target = $region8
    $region5: #{conv2d.1} parent=1 // loop_body
      %s20 = ssub.s32 %s15, 1
      %s21 = ssub.s32 %s15, 2
      %s22 = sadd.s32 %s15, 1
      %s23 = ssub.s32 %s15, %s22
      %p24 = scmp.eq.s32.totalorder %s23, 0
      %s26 = sadd.s32 %s25, 1
      %s27 = scalar_select %p24, %s25, %s26
      %p30 = pneg %p24
      %p31 = scmp.eq.s32.totalorder %s15, 1
      %p32 = por %p30, %p31
      %p33 = scmp.ne.s32.totalorder %s25, %s28
      %p34 = scmp.eq.s32.totalorder %s15, 0
      %p35 = por %p33, %p34
      %p36 = scmp.ne.s32.totalorder %s25, %s28
      %p37 = scmp.eq.s32.totalorder %s20, 1
      %p38 = por %p36, %p37
      %p39 = scmp.ne.s32.totalorder %s28, %s29
      %p40 = scmp.eq.s32.totalorder %s20, 0
      %p41 = por %p39, %p40
      %p42 = scmp.ne.s32.totalorder %s28, %s29
      %p43 = scmp.eq.s32.totalorder %s21, 1
      %p44 = por %p42, %p43
      %p46 = scmp.ne.s32.totalorder %s29, %s45
      %p47 = scmp.eq.s32.totalorder %s21, 0
      %p48 = por %p46, %p47
      %s50 = sadd.s32 %s49, 1
      %p53 = scmp.eq.s32.totalorder %s15, 1
      %p54 = scmp.ne.s32.totalorder %s49, %s51
      %p55 = scmp.eq.s32.totalorder %s15, 0
      %p56 = por %p54, %p55
      %p57 = scmp.ne.s32.totalorder %s49, %s51
      %p58 = scmp.eq.s32.totalorder %s20, 1
      %p59 = por %p57, %p58
      %p60 = scmp.ne.s32.totalorder %s51, %s52
      %p61 = scmp.eq.s32.totalorder %s20, 0
      %p62 = por %p60, %p61
      %p63 = scmp.ne.s32.totalorder %s51, %s52
      %p64 = scmp.eq.s32.totalorder %s21, 1
      %p65 = por %p63, %p64
      %p67 = scmp.ne.s32.totalorder %s52, %s66
      %p68 = scmp.eq.s32.totalorder %s21, 0
      %p69 = por %p67, %p68
      %s71 = sadd.s32 %s70, 1
      %p74 = scmp.eq.s32.totalorder %s15, 1
      %p75 = scmp.ne.s32.totalorder %s70, %s72
      %p76 = scmp.eq.s32.totalorder %s15, 0
      %p77 = por %p75, %p76
      %p78 = scmp.ne.s32.totalorder %s70, %s72
      %p79 = scmp.eq.s32.totalorder %s20, 1
      %p80 = por %p78, %p79
      %p81 = scmp.ne.s32.totalorder %s72, %s73
      %p82 = scmp.eq.s32.totalorder %s20, 0
      %p83 = por %p81, %p82
      %p84 = scmp.ne.s32.totalorder %s72, %s73
      %p85 = scmp.eq.s32.totalorder %s21, 1
      %p86 = por %p84, %p85
      %p88 = scmp.ne.s32.totalorder %s73, %s87
      %p89 = scmp.eq.s32.totalorder %s21, 0
      %p90 = por %p88, %p89
      %s91 = ssub.s32 %s15, %s22
      %p92 = scmp.eq.s32.totalorder %s91, 0
      %s94 = sadd.s32 %s93, 1
      %s95 = scalar_select %p92, %s93, %s94
      %p98 = pneg %p92
      %p99 = scmp.eq.s32.totalorder %s15, 1
      %p100 = por %p98, %p99
      %p101 = scmp.ne.s32.totalorder %s93, %s96
      %p102 = scmp.eq.s32.totalorder %s15, 0
      %p103 = por %p101, %p102
      %p104 = scmp.ne.s32.totalorder %s93, %s96
      %p105 = scmp.eq.s32.totalorder %s20, 1
      %p106 = por %p104, %p105
      %p107 = scmp.ne.s32.totalorder %s96, %s97
      %p108 = scmp.eq.s32.totalorder %s20, 0
      %p109 = por %p107, %p108
      %p110 = scmp.ne.s32.totalorder %s96, %s97
      %p111 = scmp.eq.s32.totalorder %s21, 1
      %p112 = por %p110, %p111
      %p114 = scmp.ne.s32.totalorder %s97, %s113
      %p115 = scmp.eq.s32.totalorder %s21, 0
      %p116 = por %p114, %p115
      %s117 = ssub.s32 %s15, %s22
      %p118 = scmp.eq.s32.totalorder %s117, 0
      %s120 = sadd.s32 %s119, 1
      %s121 = scalar_select %p118, %s119, %s120
      %p124 = pneg %p118
      %p125 = scmp.eq.s32.totalorder %s15, 1
      %p126 = por %p124, %p125
      %p127 = scmp.ne.s32.totalorder %s119, %s122
      %p128 = scmp.eq.s32.totalorder %s15, 0
      %p129 = por %p127, %p128
      %p130 = scmp.ne.s32.totalorder %s119, %s122
      %p131 = scmp.eq.s32.totalorder %s20, 1
      %p132 = por %p130, %p131
      %p133 = scmp.ne.s32.totalorder %s122, %s123
      %p134 = scmp.eq.s32.totalorder %s20, 0
      %p135 = por %p133, %p134
      %p136 = scmp.ne.s32.totalorder %s122, %s123
      %p137 = scmp.eq.s32.totalorder %s21, 1
      %p138 = por %p136, %p137
      %p140 = scmp.ne.s32.totalorder %s123, %s139
      %p141 = scmp.eq.s32.totalorder %s21, 0
      %p142 = por %p140, %p141
      %s143 = ssub.s32 %s15, %s22
      %p144 = scmp.eq.s32.totalorder %s143, 0
      %s146 = sadd.s32 %s145, 1
      %s147 = scalar_select %p144, %s145, %s146
      %p150 = pneg %p144
      %p151 = scmp.eq.s32.totalorder %s15, 1
      %p152 = por %p150, %p151
      %p153 = scmp.ne.s32.totalorder %s145, %s148
      %p154 = scmp.eq.s32.totalorder %s15, 0
      %p155 = por %p153, %p154
      %p156 = scmp.ne.s32.totalorder %s145, %s148
      %p157 = scmp.eq.s32.totalorder %s20, 1
      %p158 = por %p156, %p157
      %p159 = scmp.ne.s32.totalorder %s148, %s149
      %p160 = scmp.eq.s32.totalorder %s20, 0
      %p161 = por %p159, %p160
      %p162 = scmp.ne.s32.totalorder %s148, %s149
      %p163 = scmp.eq.s32.totalorder %s21, 1
      %p164 = por %p162, %p163
      %p166 = scmp.ne.s32.totalorder %s149, %s165
      %p167 = scmp.eq.s32.totalorder %s21, 0
      %p168 = por %p166, %p167
      %p169 = scmp.le.s32.totalorder 1, %s15
      %p170 = scmp.lt.s32.totalorder %s15, 3
      %p171 = pnand %p169, %p170
      %p172 = pneg %p171
      // Predicated region
      $region9: #{conv2d.1} parent=5 // pred_check
        _
      $region10: #{conv2d.1} parent=5 // pred_check_branch
        %174 = sbr.rel (%p171) target = $region12
      $region11: #{conv2d.1} parent=5 // pred_region
        %s175 = ssub.s32 %s15, 1
        // Predicated region
        $region13: #{conv2d.1} parent=11 // pred_check
          %p176 = pneg %p62
        $region14: #{conv2d.1} parent=11 // pred_check_branch
          %178 = sbr.rel (%p176) target = $region16
        $region15: #{conv2d.1} parent=11 // pred_region
          _
        $region16: #{conv2d.1} parent=11 // pred_fallthru
          _
        // Predicated region
        $region17: #{conv2d.1} parent=11 // pred_check
          %p179 = pneg %p83
        $region18: #{conv2d.1} parent=11 // pred_check_branch
          %181 = sbr.rel (%p179) target = $region20
        $region19: #{conv2d.1} parent=11 // pred_region
          _
        $region20: #{conv2d.1} parent=11 // pred_fallthru
          _
      $region12: #{conv2d.1} parent=5 // pred_fallthru
        _
      %p182 = scmp.lt.s32.totalorder %s15, 2
      // Predicated region
      $region21: #{conv2d.1} parent=5 // pred_check
        %p183 = pneg %p182
      $region22: #{conv2d.1} parent=5 // pred_check_branch
        %185 = sbr.rel (%p183) target = $region24
      $region23: #{conv2d.1} parent=5 // pred_region
        // Predicated region
        $region25: #{conv2d.1} parent=23 // pred_check
          %p186 = pneg %p35
        $region26: #{conv2d.1} parent=23 // pred_check_branch
          %188 = sbr.rel (%p186) target = $region28
        $region27: #{conv2d.1} parent=23 // pred_region
          %s189 = smul.u32 8, %s15
          %p190 = scmp.lt.s32.totalorder %s189, 15
          %s191 = scalar_select %p190, %s189, 15
          %s192 = smul.addr %s191, 4
          %s193 = scalar_lea.vmem %s0, %s192
          %s194 = smul.u32 8, %s15
        $region28: #{conv2d.1} parent=23 // pred_fallthru
          _
      $region24: #{conv2d.1} parent=5 // pred_fallthru
        _
      %p195 = scmp.le.s32.totalorder 1, %s15
      %p196 = scmp.lt.s32.totalorder %s15, 3
      %p197 = pnand %p195, %p196
      %p198 = pneg %p197
      // Predicated region
      $region29: #{conv2d.1} parent=5 // pred_check
        _
      $region30: #{conv2d.1} parent=5 // pred_check_branch
        %200 = sbr.rel (%p197) target = $region32
      $region31: #{conv2d.1} parent=5 // pred_region
        %s201 = ssub.s32 %s15, 1
        %s202 = smul.u32 8, %s20
        %p203 = scmp.lt.s32.totalorder %s202, 15
        %s204 = scalar_select %p203, %s202, 15
        %s205 = smul.addr %s204, 4
        %s206 = scalar_lea.vmem %s0, %s205
        %p207 = pneg %p41
        %p208 = pneg %p38
        %p209 = pneg %p62
        %p210 = pneg %p59
        %p211 = pneg %p83
        %p212 = pneg %p80
        %p213 = pneg %p109
        %p214 = pneg %p106
        %s215 = sand.u32 %s96, 1
        %s216 = scalar_lea.sflag [#allocation3], %s215
        %s217 = sand.u32 %s96, 1
        %s218 = smul.addr %s217, 32
        %s219 = scalar_lea.vmem [#allocation2], %s218
        %p220 = pneg %p135
        %p221 = pneg %p132
        %p222 = scmp.lt.s32.totalorder %s20, 1
        %s223 = scalar_select %p222, %s20, 1
        %s224 = scalar_lea.vmem %s4, %s223
        %p225 = pneg %p161
        %p226 = pneg %p158
        %p227 = scmp.lt.s32.totalorder %s20, 1
        %s228 = scalar_select %p227, %s20, 1
        %s229 = scalar_lea.vmem %s5, %s228
        %s230 = smul.u32 8, %s20
        %p231 = scmp.lt.s32.totalorder %s230, 15
        %s232 = scalar_select %p231, %s230, 15
        %s233 = smul.addr %s232, 4
        %s234 = scalar_lea.vmem %s0, %s233
        %s235 = smul.u32 8, %s20
        %s236 = smul.u32 8, %s20
        %p237 = scmp.lt.s32.totalorder %s20, 1
        %s238 = scalar_select %p237, %s20, 1
        %s239 = scalar_lea.vmem %s4, %s238
        %p240 = scmp.lt.s32.totalorder %s20, 1
        %s241 = scalar_select %p240, %s20, 1
        %s242 = scalar_lea.vmem %s5, %s241
        %v244 = vld [vmem:[%s234] sm:$0xf]
        %v245 = vld [vmem:[%s234 + $0x4] sm:$0xf]
        %v246 = vld [vmem:[%s234 + $0x8] sm:$0xf]
        %v247 = vld [vmem:[%s234 + $0xc] sm:$0xf]
        %v248 = vld [vmem:[%s234 + $0x10] sm:$0xf]
        %v249 = vld [vmem:[%s234 + $0x14] sm:$0xf]
        %v250 = vld [vmem:[%s234 + $0x18] sm:$0xf]
        %v251 = vld [vmem:[%s234 + $0x1c] sm:$0xf]
        %v252 = vld [vmem:[%s1] sm:$0xf]
        %v253 = vld [vmem:[%s1 + $0x4] sm:$0xf]
        %v254 = vld [vmem:[%s1 + $0x8] sm:$0xf]
        %v255 = vld [vmem:[%s1 + $0xc] sm:$0xf]
        %v256 = vld [vmem:[%s2] sm:$0x1]
        %v258 = vlaneseq
        %v259 = vshrl.u32 %v258, 7
        %v260 = vsub.s32 0, %v259
        %v261 = vrot.slane %v256, %v260
        %v271 = vunpack.c.l.b16 %v244
        %v272 = vunpack.c.l.b16 %v245
        %v273 = vunpack.c.l.b16 %v246
        %v274 = vunpack.c.l.b16 %v247
        %v275 = vunpack.c.l.b16 %v248
        %v276 = vunpack.c.l.b16 %v249
        %v277 = vunpack.c.l.b16 %v250
        %v278 = vunpack.c.l.b16 %v251
        %v279 = vpack.c.b16 %v272, %v271
        %v280 = vpack.c.b16 %v274, %v273
        %v281 = vpack.c.b16 %v276, %v275
        %v282 = vpack.c.b16 %v278, %v277
        %v287 = vunpack.c.l.b16 %v252
        %v288 = vunpack.c.l.b16 %v253
        %v289 = vunpack.c.l.b16 %v254
        %v290 = vunpack.c.l.b16 %v255
        %v291 = vpack.c.b16 %v288, %v287
        %v292 = vpack.c.b16 %v290, %v289
        %vm295 = vcmask 261120
        %v297 = vsel %vm295, %v279, 0
        %v300 = vsel %vm295, %v280, 0
        %v303 = vsel %vm295, %v281, 0
        %v306 = vsel %vm295, %v282, 0
        %308 = vmatprep.subr.bf16.mxu0 0
        %309 = vmatpush1.bf16.msra.mxu0 0
        %310 = vmatprep.subr.bf16.mxu0 0
        %311 = vmatpush1.bf16.msra.mxu0 0
        %312 = vmatprep.subr.bf16.mxu0 0
        %313 = vmatpush1.bf16.msra.mxu0 0
        %314 = vmatprep.subr.bf16.mxu0 0
        %315 = vmatpush1.bf16.msra.mxu0 0
        %316 = vmatprep.subr.bf16.mxu0 0
        %317 = vmatpush1.bf16.msra.mxu0 0
        %318 = vmatprep.subr.bf16.mxu0 0
        %319 = vmatpush1.bf16.msra.mxu0 0
        %320 = vmatprep.subr.bf16.mxu0 0
        %321 = vmatpush1.bf16.msra.mxu0 %v292
        %322 = vmatprep.subr.bf16.mxu0 0
        %323 = vmatpush1.bf16.msra.mxu0 %v291
        %324 = vmatprep.subr.bf16.mxu0 0
        %325 = vmatpush2.bf16.msra.mxu0 0
        %326 = vmatprep.subr.bf16.mxu0 0
        %327 = vmatpush2.bf16.msra.mxu0 0
        %328 = vmatprep.subr.bf16.mxu0 0
        %329 = vmatpush2.bf16.msra.mxu0 0
        %330 = vmatprep.subr.bf16.mxu0 0
        %331 = vmatpush2.bf16.msra.mxu0 0
        %332 = vmatprep.subr.bf16.mxu0 0
        %333 = vmatpush2.bf16.msra.mxu0 0
        %334 = vmatprep.subr.bf16.mxu0 0
        %335 = vmatpush2.bf16.msra.mxu0 0
        %336 = vmatprep.subr.bf16.mxu0 0
        %337 = vmatpush2.bf16.msra.mxu0 0
        %338 = vmatprep.subr.bf16.mxu0 0
        %339 = vmatpush2.bf16.msra.mxu0 0
        %340 = vmatprep.mubr.bf16.mxu0 0
        %341 = vmatmul.mubr.bf16.gmra.mxu0 %v297
        %v342 = vpop.f32.mrf.mxu0
        %v343 = vadd.f32 %v261, %v342
        %v344 = vpop.f32.mrf.mxu0
        %v345 = vpop.f32.mrf.mxu0
        %v346 = vadd.f32 %v261, %v345
        %v347 = vpop.f32.mrf.mxu0
        %348 = vmatprep.mubr.bf16.mxu0 0
        %349 = vmatmul.mubr.bf16.gmra.mxu0 %v300
        %v350 = vpop.f32.mrf.mxu0
        %v351 = vadd.f32 %v261, %v350
        %v352 = vpop.f32.mrf.mxu0
        %v353 = vpop.f32.mrf.mxu0
        %v354 = vadd.f32 %v261, %v353
        %v355 = vpop.f32.mrf.mxu0
        %356 = vmatprep.mubr.bf16.mxu0 0
        %357 = vmatmul.mubr.bf16.gmra.mxu0 %v303
        %v358 = vpop.f32.mrf.mxu0
        %v359 = vadd.f32 %v261, %v358
        %v360 = vpop.f32.mrf.mxu0
        %v361 = vpop.f32.mrf.mxu0
        %v362 = vadd.f32 %v261, %v361
        %v363 = vpop.f32.mrf.mxu0
        %364 = vmatprep.mubr.bf16.mxu0 0
        %365 = vmatmul.mubr.bf16.gmra.mxu0 %v306
        %v366 = vpop.f32.mrf.mxu0
        %v367 = vadd.f32 %v261, %v366
        %v368 = vpop.f32.mrf.mxu0
        %v369 = vpop.f32.mrf.mxu0
        %v370 = vadd.f32 %v261, %v369
        %v371 = vpop.f32.mrf.mxu0
        %372 = vdwg.mxu0
        %v373 = vpack.c.bf16 %v346, %v343
        %v374 = vpack.c.bf16 %v354, %v351
        %v375 = vpack.c.bf16 %v362, %v359
        %v376 = vpack.c.bf16 %v370, %v367
        %v381 = vunpack.c.l.b16 %v373
        %v382 = vunpack.c.h.b16 %v373
        %v383 = vunpack.c.l.b16 %v374
        %v384 = vunpack.c.h.b16 %v374
        %v385 = vunpack.c.l.b16 %v375
        %v386 = vunpack.c.h.b16 %v375
        %v387 = vunpack.c.l.b16 %v376
        %v388 = vunpack.c.h.b16 %v376
        %v389 = vpack.c.b16 %v381, %v381
        %v390 = vpack.c.b16 %v382, %v382
        %v391 = vpack.c.b16 %v383, %v383
        %v392 = vpack.c.b16 %v384, %v384
        %v393 = vpack.c.b16 %v385, %v385
        %v394 = vpack.c.b16 %v386, %v386
        %v395 = vpack.c.b16 %v387, %v387
        %v396 = vpack.c.b16 %v388, %v388
        %vm405 = vcmask 101376
        %406 = vst.msk [vmem:[%s219] sm:$0xf] %vm405, %v389
        %407 = vst.msk [vmem:[%s219 + $0x4] sm:$0xf] %vm405, %v390
        %408 = vst.msk [vmem:[%s219 + $0x8] sm:$0xf] %vm405, %v391
        %409 = vst.msk [vmem:[%s219 + $0xc] sm:$0xf] %vm405, %v392
        %410 = vst.msk [vmem:[%s219 + $0x10] sm:$0xf] %vm405, %v393
        %411 = vst.msk [vmem:[%s219 + $0x14] sm:$0xf] %vm405, %v394
        %412 = vst.msk [vmem:[%s219 + $0x18] sm:$0xf] %vm405, %v395
        %413 = vst.msk [vmem:[%s219 + $0x1c] sm:$0xf] %vm405, %v396
        %s414 = smul.u32 %s20, 64
        %v415 = vlaneseq
        %v416 = vshrl.u32 %v415, 7
        %v417 = vadd.s32 %v416, 8
        %v418 = vadd.s32 %v416, 16
        %v419 = vadd.s32 %v416, 24
        %v420 = vadd.s32 %v416, 32
        %v421 = vadd.s32 %v416, 40
        %v422 = vadd.s32 %v416, 48
        %v423 = vadd.s32 %v416, 56
        %v424 = vstv %s414
        %v425 = vadd.s32 %v424, %v416
        %v426 = vadd.s32 %v424, %v417
        %v427 = vadd.s32 %v424, %v418
        %v428 = vadd.s32 %v424, %v419
        %v429 = vadd.s32 %v424, %v420
        %v430 = vadd.s32 %v424, %v421
        %v431 = vadd.s32 %v424, %v422
        %v432 = vadd.s32 %v424, %v423
        %vm433 = vcmp.lt.s32.totalorder %v425, 128
        %vm434 = vcmp.lt.s32.totalorder %v426, 128
        %vm435 = vcmp.lt.s32.totalorder %v427, 128
        %vm436 = vcmp.lt.s32.totalorder %v428, 128
        %vm437 = vcmp.lt.s32.totalorder %v429, 128
        %vm438 = vcmp.lt.s32.totalorder %v430, 128
        %vm439 = vcmp.lt.s32.totalorder %v431, 128
        %vm440 = vcmp.lt.s32.totalorder %v432, 128
        %v441 = vsel %vm433, %v343, 0.0
        %v442 = vsel %vm434, %v346, 0.0
        %v443 = vsel %vm435, %v351, 0.0
        %v444 = vsel %vm436, %v354, 0.0
        %v445 = vsel %vm437, %v359, 0.0
        %v446 = vsel %vm438, %v362, 0.0
        %v447 = vsel %vm439, %v367, 0.0
        %v448 = vsel %vm440, %v370, 0.0
        %vm449 = vcmask 105472
        %v450 = vsel %vm449, %v441, 0.0
        %v451 = vsel %vm449, %v442, 0.0
        %v452 = vadd.f32 %v450, %v451
        %v453 = vsel %vm449, %v443, 0.0
        %v454 = vadd.f32 %v452, %v453
        %v455 = vsel %vm449, %v444, 0.0
        %v456 = vadd.f32 %v454, %v455
        %v457 = vsel %vm449, %v445, 0.0
        %v458 = vadd.f32 %v456, %v457
        %v459 = vsel %vm449, %v446, 0.0
        %v460 = vadd.f32 %v458, %v459
        %v461 = vsel %vm449, %v447, 0.0
        %v462 = vadd.f32 %v460, %v461
        %v463 = vsel %vm449, %v448, 0.0
        %v464 = vadd.f32 %v462, %v463
        %v465 = vrot.slane %v464, 4
        %v466 = vadd.f32 %v464, %v465
        %v467 = vrot.slane %v466, 2
        %v468 = vadd.f32 %v466, %v467
        %v469 = vrot.slane %v468, 1
        %v470 = vadd.f32 %v468, %v469
        %vm471 = vcmask 98304
        %472 = vst.msk [vmem:[%s239] sm:$0x1] %vm471, %v470
        %v473 = vmul.f32 %v441, %v441
        %v474 = vmul.f32 %v442, %v442
        %v475 = vmul.f32 %v443, %v443
        %v476 = vmul.f32 %v444, %v444
        %v477 = vmul.f32 %v445, %v445
        %v478 = vmul.f32 %v446, %v446
        %v479 = vmul.f32 %v447, %v447
        %v480 = vmul.f32 %v448, %v448
        %v481 = vsel %vm449, %v473, 0.0
        %v482 = vsel %vm449, %v474, 0.0
        %v483 = vadd.f32 %v481, %v482
        %v484 = vsel %vm449, %v475, 0.0
        %v485 = vadd.f32 %v483, %v484
        %v486 = vsel %vm449, %v476, 0.0
        %v487 = vadd.f32 %v485, %v486
        %v488 = vsel %vm449, %v477, 0.0
        %v489 = vadd.f32 %v487, %v488
        %v490 = vsel %vm449, %v478, 0.0
        %v491 = vadd.f32 %v489, %v490
        %v492 = vsel %vm449, %v479, 0.0
        %v493 = vadd.f32 %v491, %v492
        %v494 = vsel %vm449, %v480, 0.0
        %v495 = vadd.f32 %v493, %v494
        %v496 = vrot.slane %v495, 4
        %v497 = vadd.f32 %v495, %v496
        %v498 = vrot.slane %v497, 2
        %v499 = vadd.f32 %v497, %v498
        %v500 = vrot.slane %v499, 1
        %v501 = vadd.f32 %v499, %v500
        %502 = vst.msk [vmem:[%s242] sm:$0x1] %vm471, %v501
        %s503 = sand.u32 %s96, 1
        %s504 = scalar_lea.sflag [#allocation3], %s503
        %s505 = sand.u32 %s96, 1
        %s506 = smul.addr %s505, 32
        %s507 = scalar_lea.vmem [#allocation2], %s506
        %p508 = scmp.lt.s32.totalorder %s20, 1
        %s509 = scalar_select %p508, %s20, 1
        %s510 = scalar_lea.vmem %s4, %s509
        %p511 = scmp.lt.s32.totalorder %s20, 1
        %s512 = scalar_select %p511, %s20, 1
        %s513 = scalar_lea.vmem %s5, %s512
        // Predicated region
        $region33: #{conv2d.1} parent=31 // pred_check
          %p514 = pneg %p106
        $region34: #{conv2d.1} parent=31 // pred_check_branch
          %516 = sbr.rel (%p514) target = $region36
        $region35: #{conv2d.1} parent=31 // pred_region
          %s517 = smul.u32 8, %s20
          %s519 = ssub.s32 512, 512
          %520 = vsyncadd %s504, %s519
          %s521 = smul.addr %s517, 64
          %s522 = scalar_lea.hbm %s3, %s521
          %s523 = sshll.u32 %s507, 4
          %s524 = int_to_ptr.vmem [resolvable:$true] %s523
          %529 = dma.vmem_to_hbm [thread:$0]  %s524, 512, %s522, %s504, 64, 64, 4
        $region36: #{conv2d.1} parent=31 // pred_fallthru
          _
        // Predicated region
        $region37: #{conv2d.1} parent=31 // pred_check
          %p530 = pneg %p132
        $region38: #{conv2d.1} parent=31 // pred_check_branch
          %532 = sbr.rel (%p530) target = $region40
        $region39: #{conv2d.1} parent=31 // pred_region
          _
        $region40: #{conv2d.1} parent=31 // pred_fallthru
          _
        // Predicated region
        $region41: #{conv2d.1} parent=31 // pred_check
          %p533 = pneg %p158
        $region42: #{conv2d.1} parent=31 // pred_check_branch
          %535 = sbr.rel (%p533) target = $region44
        $region43: #{conv2d.1} parent=31 // pred_region
          _
        $region44: #{conv2d.1} parent=31 // pred_fallthru
          _
      $region32: #{conv2d.1} parent=5 // pred_fallthru
        _
      %p536 = scmp.le.s32.totalorder 2, %s15
      // Predicated region
      $region45: #{conv2d.1} parent=5 // pred_check
        %p537 = pneg %p536
      $region46: #{conv2d.1} parent=5 // pred_check_branch
        %539 = sbr.rel (%p537) target = $region48
      $region47: #{conv2d.1} parent=5 // pred_region
        %s540 = ssub.s32 %s15, 2
        // Predicated region
        $region49: #{conv2d.1} parent=47 // pred_check
          %p541 = pneg %p112
        $region50: #{conv2d.1} parent=47 // pred_check_branch
          %543 = sbr.rel (%p541) target = $region52
        $region51: #{conv2d.1} parent=47 // pred_region
          %s544 = sand.u32 %s97, 1
          %s545 = scalar_lea.sflag [#allocation3], %s544
          %s546 = sand.u32 %s97, 1
          %s547 = smul.addr %s546, 32
          %s548 = scalar_lea.vmem [#allocation2], %s547
          %549 = dma.done %s545, 512
        $region52: #{conv2d.1} parent=47 // pred_fallthru
          _
        // Predicated region
        $region53: #{conv2d.1} parent=47 // pred_check
          %p550 = pneg %p138
        $region54: #{conv2d.1} parent=47 // pred_check_branch
          %552 = sbr.rel (%p550) target = $region56
        $region55: #{conv2d.1} parent=47 // pred_region
          %p553 = scmp.lt.s32.totalorder %s21, 1
          %s554 = scalar_select %p553, %s21, 1
          %s555 = scalar_lea.vmem %s4, %s554
        $region56: #{conv2d.1} parent=47 // pred_fallthru
          _
        // Predicated region
        $region57: #{conv2d.1} parent=47 // pred_check
          %p556 = pneg %p164
        $region58: #{conv2d.1} parent=47 // pred_check_branch
          %558 = sbr.rel (%p556) target = $region60
        $region59: #{conv2d.1} parent=47 // pred_region
          %p559 = scmp.lt.s32.totalorder %s21, 1
          %s560 = scalar_select %p559, %s21, 1
          %s561 = scalar_lea.vmem %s5, %s560
        $region60: #{conv2d.1} parent=47 // pred_fallthru
          _
      $region48: #{conv2d.1} parent=5 // pred_fallthru
        _
    $region6: #{conv2d.1} parent=1 // loop_footer
      %s19 = sadd.s32 1, %s15
    $region7: #{conv2d.1} parent=1 // loop_footer_branch
      %14 = sbr.rel target = $region3
    $region8: #{conv2d.1} parent=1 // loop_exit
      _
    %562 = vsyncpa [#allocation3], 1
    %s563 = scalar_lea.sflag [#allocation3], 1
    %564 = vsyncpa %s563, 1

</llo_original>
